<compile_context>
chip_gen: v7x
topology: tpu7x:2x2x1
jax: 0.10.0
libtpu: 0.0.40
codegen_flags: <defaults>
</compile_context>

<pallas_src>
import jax
import jax.numpy as jnp
from jax.experimental import pallas as pl
from jax.experimental.pallas import tpu as pltpu


def _lateral_kernel(x_ref, w_ref, shift_ref, o_ref):
    # x_ref:     (1, C*T, hw_tile)        f32   rows ordered [c*T + t]
    # w_ref:     (C2*T_out, C*T)          bf16  block-banded, BN scale folded
    # shift_ref: (C2*T_out, 1)            f32   folded BN shift
    # o_ref:     (1, C2*T_out, hw_tile)   out dtype, rows ordered [co*T_out + t]
    xb = x_ref[0].astype(jnp.bfloat16)                              # cast in VMEM (free slack)
    acc = jnp.dot(w_ref[...], xb, preferred_element_type=jnp.float32)  # one MXU matmul
    y = jnp.maximum(acc + shift_ref[...], 0.0)                      # BN shift + ReLU in f32
    o_ref[0] = y.astype(o_ref.dtype)


def _vmem_capacity_bytes():
    try:
        info = pltpu.get_tpu_info()
        return int(getattr(info, "vmem_capacity_bytes", 64 << 20))
    except Exception:
        return 64 << 20


def _pick_hw_tile(HW, in_rows, out_rows, n_batch, out_bytes, budget_bytes):
    """Lane-dense (128-multiple) HW tile whose double-buffered blocks fit the budget."""
    if HW <= 128:
        return HW                                  # full lane axis (equals the array dim)
    # double-buffered f32 input block + double-buffered output block, per lane column
    per_lane = 2 * in_rows * 4 + 2 * out_rows * out_bytes
    cap = max(128, (budget_bytes // max(per_lane, 1)) // 128 * 128)
    hw_ceil = ((HW + 127) // 128) * 128
    tile = min(cap, 2048, hw_ceil)
    # keep at least 2 grid blocks total so both v7x TensorCores get work
    while n_batch * pl.cdiv(HW, tile) < 2 and tile > 128:
        tile = max(128, ((tile // 2) // 128) * 128)
    return tile


def basic_lateral(x, weight, gamma, beta, running_mean, running_var,
                  eps=1e-5, out_dtype=jnp.bfloat16):
    """x: (N, C, T, H, W) float32 (PyTorch NCDHW). Returns (N, 2C, T_out, H, W) in out_dtype."""
    N, C, T, H, W = x.shape
    K, stride, pad = 5, 4, 2
    C2 = 2 * C
    T_out = (T + 2 * pad - K) // stride + 1
    HW = H * W
    in_rows, out_rows = C * T, C2 * T_out

    # ---- zero-cost input view: (N,C,T,H,W) -> (N, C*T, HW); no transpose, no cast ----
    x_r = x.reshape(N, in_rows, HW)

    # ---- fold eval-mode BatchNorm (scale into the weight, shift added in-kernel) ----
    # TODO(synk): training-mode BN (batch statistics) is not implemented; eval-mode stats used.
    inv_std = 1.0 / jnp.sqrt(running_var.astype(jnp.float32) + eps)
    scale = gamma.astype(jnp.float32) * inv_std                                  # (C2,)
    shift = beta.astype(jnp.float32) - running_mean.astype(jnp.float32) * scale  # (C2,)
    shift_band = jnp.repeat(shift, T_out).reshape(out_rows, 1)                   # row co*T_out+t

    # ---- block-banded weight: one MXU matmul covers all taps, frames & the pad boundary ----
    # W_band[co*T_out + t, c*T + tau] = scale[co] * weight[co, c, k]
    #   where k = tau - (t*stride - pad), 0 <= k < K, 0 <= tau < T   (zero elsewhere)
    w_s = weight.reshape(C2, C, K).astype(jnp.float32) * scale[:, None, None]
    t_i = jnp.arange(T_out)[:, None, None]
    k_i = jnp.arange(K)[None, :, None]
    tau_i = jnp.arange(T)[None, None, :]
    sel = (tau_i == t_i * stride - pad + k_i).astype(jnp.float32)                # (T_out, K, T)
    w_band = jnp.einsum('ock,tkx->otcx', w_s, sel).reshape(out_rows, in_rows)
    w_band = w_band.astype(jnp.bfloat16)
    # TODO(synk): for very large C*T the band's ~T/K flop inflation nears the compute
    # roofline (esp. v5e); a per-frame-matmul fallback would be preferable there.

    # ---- tiling / VMEM budget (per generation) ----
    vmem_cap = _vmem_capacity_bytes()
    big_vmem = vmem_cap >= (128 << 20)               # v5e / v6e
    budget = (20 << 20) if big_vmem else (8 << 20)   # v7x has 64 MiB (32 MiB scoped)
    vmem_limit = (64 << 20) if big_vmem else (32 << 20)
    out_bytes = jax.dtypes.canonicalize_dtype(out_dtype).itemsize
    hw_tile = _pick_hw_tile(HW, in_rows, out_rows, N, out_bytes, budget)
    n_hw = pl.cdiv(HW, hw_tile)

    flops = 2 * N * out_rows * in_rows * HW
    bytes_accessed = (N * in_rows * HW * 4) + (out_rows * in_rows * 2) \
                     + (N * out_rows * HW * out_bytes)

    out = pl.pallas_call(
        _lateral_kernel,
        out_shape=jax.ShapeDtypeStruct((N, out_rows, HW), out_dtype),
        grid_spec=pltpu.PrefetchScalarGridSpec(
            num_scalar_prefetch=0,
            grid=(N, n_hw),
            in_specs=[
                pl.BlockSpec((1, in_rows, hw_tile), lambda n, h: (n, 0, h)),
                pl.BlockSpec((out_rows, in_rows), lambda n, h: (0, 0)),
                pl.BlockSpec((out_rows, 1), lambda n, h: (0, 0)),
            ],
            out_specs=pl.BlockSpec((1, out_rows, hw_tile), lambda n, h: (n, 0, h)),
        ),
        compiler_params=pltpu.CompilerParams(
            dimension_semantics=("parallel", "parallel"),
            vmem_limit_bytes=vmem_limit),
        cost_estimate=pl.CostEstimate(flops=flops, transcendentals=0,
                                      bytes_accessed=bytes_accessed),
    )(x_r, w_band, shift_band)

    # zero-cost output view: rows [co*T_out + t] -> PyTorch NCDHW
    return out.reshape(N, C2, T_out, H, W)


def _reference(x, weight, gamma, beta, running_mean, running_var, eps=1e-5):
    """Pure-jnp f32 reference of the same forward (eval-mode BN)."""
    N, C, T, H, W = x.shape
    K, stride, pad = 5, 4, 2
    C2 = 2 * C
    T_out = (T + 2 * pad - K) // stride + 1
    HW = H * W
    xt = jnp.transpose(x, (0, 2, 1, 3, 4)).reshape(N, T, C, HW)
    x_pad = jnp.pad(xt, ((0, 0), (pad, pad), (0, 0), (0, 0)))
    windows = jnp.stack([x_pad[:, stride * t:stride * t + K] for t in range(T_out)],
                        axis=1)                                      # (N, T_out, K, C, HW)
    w = jnp.transpose(weight.reshape(C2, C, K), (0, 2, 1))           # (C2, K, C)
    conv = jnp.einsum('ntkcs,okc->ntos', windows, w)                 # (N, T_out, C2, HW)
    inv_std = 1.0 / jnp.sqrt(running_var + eps)
    scale = (gamma * inv_std).reshape(1, 1, C2, 1)
    shift = (beta - running_mean * gamma * inv_std).reshape(1, 1, C2, 1)
    y = jnp.maximum(conv * scale + shift, 0.0)
    return jnp.transpose(y.reshape(N, T_out, C2, H, W), (0, 2, 1, 3, 4))


if __name__ == "__main__":
    # small shapes consistent with the module: NCDHW = (2, 4, 8, 16, 16)
    N, C, T, H, W = 2, 4, 8, 16, 16
    C2, K = 2 * C, 5

    key = jax.random.PRNGKey(0)
    kx, kw, kg, kb = jax.random.split(key, 4)

    x = jax.random.normal(kx, (N, C, T, H, W), dtype=jnp.float32)
    weight = jax.random.normal(kw, (C2, C, K, 1, 1), dtype=jnp.float32) * 0.1
    gamma = 1.0 + 0.1 * jax.random.normal(kg, (C2,), dtype=jnp.float32)
    beta = 0.1 * jax.random.normal(kb, (C2,), dtype=jnp.float32)
    running_mean = jnp.zeros((C2,), jnp.float32)   # PyTorch BN default running stats
    running_var = jnp.ones((C2,), jnp.float32)

    out = basic_lateral(x, weight, gamma, beta, running_mean, running_var)
    out = jax.block_until_ready(out)

    ref = _reference(x, weight, gamma, beta, running_mean, running_var)
    T_out = (T + 2 * 2 - K) // 4 + 1
    assert out.shape == (N, C2, T_out, H, W), out.shape
    # bf16 weights/activations with f32 MXU accumulation + bf16 output store
    # -> loose-but-safe tolerance vs the f32 reference
    out_f32 = out.astype(jnp.float32)
    err = float(jnp.max(jnp.abs(out_f32 - ref)))
    assert jnp.allclose(out_f32, ref, atol=5e-2, rtol=5e-2), \
        f"mismatch vs reference, max abs err = {err}"

    print("KERNEL_OK")
</pallas_src>

<mosaic_0001>
module attributes {stable_mosaic.version = 11 : i64} {
  func.func @_lateral_kernel(%arg0: i32, %arg1: i32, %arg2: memref<1x32x256xf32, #tpu.memory_space<vmem>>, %arg3: memref<16x32xbf16, #tpu.memory_space<vmem>>, %arg4: memref<16x1xf32, #tpu.memory_space<vmem>>, %arg5: memref<1x16x256xbf16, #tpu.memory_space<vmem>>) attributes {dimension_semantics = [#tpu.dimension_semantics<parallel>, #tpu.dimension_semantics<parallel>], iteration_bounds = array<i64: 2, 1>, scalar_prefetch = 0 : i64, scratch_operands = 0 : i64, tpu.core_type = #tpu.core_type<tc>, window_params = [{transform_indices = @transform_0, window_bounds = array<i64: 1, 32, 256>}, {pipeline_mode = #tpu.pipeline_mode<synchronous>, transform_indices = @transform_1, window_bounds = array<i64: 16, 32>}, {pipeline_mode = #tpu.pipeline_mode<synchronous>, transform_indices = @transform_2, window_bounds = array<i64: 16, 1>}, {transform_indices = @transform_3, window_bounds = array<i64: 1, 16, 256>}]} {
    %c0 = arith.constant 0 : index
    %c0_0 = arith.constant 0 : index
    %c0_1 = arith.constant 0 : index
    %0 = vector.load %arg2[%c0, %c0_0, %c0_1] : memref<1x32x256xf32, #tpu.memory_space<vmem>>, vector<1x32x256xf32>
    %1 = vector.shape_cast %0 : vector<1x32x256xf32> to vector<32x256xf32>
    %2 = arith.truncf %1 : vector<32x256xf32> to vector<32x256xbf16>
    %c0_2 = arith.constant 0 : index
    %c0_3 = arith.constant 0 : index
    %3 = vector.load %arg3[%c0_2, %c0_3] : memref<16x32xbf16, #tpu.memory_space<vmem>>, vector<16x32xbf16>
    %cst = arith.constant dense<0.000000e+00> : vector<16x256xf32>
    %4 = tpu.matmul %3, %2, %cst {dimension_numbers = #tpu.dot_dimension_numbers<[1], [0], [0], [1], [0, 0, 1, 1], [], []>} : vector<16x32xbf16>, vector<32x256xbf16>, vector<16x256xf32> -> vector<16x256xf32>
    %c0_4 = arith.constant 0 : index
    %c0_5 = arith.constant 0 : index
    %5 = vector.load %arg4[%c0_4, %c0_5] : memref<16x1xf32, #tpu.memory_space<vmem>>, vector<16x1xf32>
    %6 = vector.broadcast %5 : vector<16x1xf32> to vector<16x256xf32>
    %7 = arith.addf %4, %6 : vector<16x256xf32>
    %cst_6 = arith.constant 0.000000e+00 : f32
    %8 = vector.broadcast %cst_6 : f32 to vector<16x256xf32>
    %9 = arith.maximumf %7, %8 : vector<16x256xf32>
    %10 = arith.truncf %9 : vector<16x256xf32> to vector<16x256xbf16>
    %c0_7 = arith.constant 0 : index
    %c0_8 = arith.constant 0 : index
    %c0_9 = arith.constant 0 : index
    %11 = vector.load %arg5[%c0_7, %c0_8, %c0_9] : memref<1x16x256xbf16, #tpu.memory_space<vmem>>, vector<1x16x256xbf16>
    %12 = vector.shape_cast %11 : vector<1x16x256xbf16> to vector<16x256xbf16>
    %13 = vector.shape_cast %10 : vector<16x256xbf16> to vector<1x16x256xbf16>
    tpu.vector_store %arg5[%c0_7, %c0_8, %c0_9], %13 {strides = array<i32>} : memref<1x16x256xbf16, #tpu.memory_space<vmem>>, vector<1x16x256xbf16>,
    return
  }
  func.func @transform_0(%arg0: i32, %arg1: i32) -> (i32, i32, i32) {
    %c0_i32 = arith.constant 0 : i32
    %c0_i32_0 = arith.constant 0 : i32
    return %arg0, %c0_i32, %arg1 : i32, i32, i32
  }
  func.func @transform_1(%arg0: i32, %arg1: i32) -> (i32, i32) {
    %c0_i32 = arith.constant 0 : i32
    %c0_i32_0 = arith.constant 0 : i32
    %c0_i32_1 = arith.constant 0 : i32
    return %c0_i32, %c0_i32_0 : i32, i32
  }
  func.func @transform_2(%arg0: i32, %arg1: i32) -> (i32, i32) {
    %c0_i32 = arith.constant 0 : i32
    %c0_i32_0 = arith.constant 0 : i32
    %c0_i32_1 = arith.constant 0 : i32
    return %c0_i32, %c0_i32_0 : i32, i32
  }
  func.func @transform_3(%arg0: i32, %arg1: i32) -> (i32, i32, i32) {
    %c0_i32 = arith.constant 0 : i32
    %c0_i32_0 = arith.constant 0 : i32
    return %arg0, %c0_i32, %arg1 : i32, i32, i32
  }
}

</mosaic_0001>

<llo_original>
// kernel: tpu_custom_call.1
$region0: #{tpu_custom_call.1}
  #allocation0 [shape = 'u32[]', space=smem, size = 0x4, offset = 0x4, fixed_abs, tag = 'smem constant byte address 0x4 - core index']
  #allocation1 [shape = 'u32[144,128]{1,0:T(1,128)}', space=vmem, size = 0x12000, scoped, tag = 'internal scratch']
  %s0 = inlined_call_operand.hbm [shape: f32[2,32,256], index: 0, kind: input, shape index: {}]
  %s1 = inlined_call_operand.vmem [shape: bf16[16,32], index: 1, kind: input, shape index: {}]
  %s2 = inlined_call_operand.vmem [shape: f32[16,1], index: 2, kind: input, shape index: {}]
  %s3 = inlined_call_operand.hbm [shape: bf16[2,16,256], index: 3, kind: output, shape index: {}]
  %s4 = sld [smem:[#allocation0]]
  $region49: #{tpu_custom_call.1} parent=0
    _
  %s6 = ssub.s32 1, %s4
  %s7 = scalar_select 0, %s6, %s4
  $region1: #{tpu_custom_call.1} parent=0
    #allocation2 [shape = 'u8[65536]{0}', space=vmem, size = 0x10000, scoped, tag = 'input window, operand 0']
    #allocation3 [shape = 's32[2]{0}', space=sflag, size = 0x8, scoped, tag = 'scoped memory for tpu_custom_call.1']
    #allocation4 [shape = 's32[2]{0}', space=sflag, size = 0x8, scoped, tag = 'scoped memory for tpu_custom_call.1']
    #allocation5 [shape = 'u8[16384]{0}', space=vmem, size = 0x4000, scoped, tag = 'output window, operand 0']
    %8 = vsyncpa [#allocation3], 0
    %s9 = scalar_lea.sflag [#allocation3], 1
    %10 = vsyncpa %s9, 0
    %11 = vsyncpa [#allocation4], 0
    %s12 = scalar_lea.sflag [#allocation4], 1
    %13 = vsyncpa %s12, 0
    loop: start=0, step=1, limit=4
    $region2: #{tpu_custom_call.1} parent=1 // loop_pre_header
      _
    $region3: #{tpu_custom_call.1} parent=1 // loop_header
      %s15 = sphi 0, %s19
      %p16 = scmp.ge.s32.totalorder %s15, 4
      %s22 = sphi 0, %s34
      %s23 = sphi 0, %s30
      %s24 = sphi 0, %s22
      %s25 = sphi 0, %s23
      %s26 = sphi 0, %s24
      %s27 = sphi 0, %s25
      %s39 = sphi 0, %s41
      %s42 = sphi 0, %s39
      %s43 = sphi 0, %s42
      %s59 = sphi 0, %s43
      %s63 = sphi 0, %s63
      %s65 = sphi 0, %s63
      %s66 = sphi 0, %s65
      %s80 = sphi 0, %s66
      %s84 = sphi 0, %s84
      %s86 = sphi 0, %s84
      %s87 = sphi 0, %s86
      %s101 = sphi 0, %s87
      %s109 = sphi 0, %s111
      %s112 = sphi 0, %s109
      %s113 = sphi 0, %s112
      %s129 = sphi 0, %s113
    $region4: #{tpu_custom_call.1} parent=1 // loop_header_branch
      %18 = sbr.rel (%p16) target = $region8
    $region5: #{tpu_custom_call.1} parent=1 // loop_body
      %s20 = ssub.s32 %s15, 1
      %s21 = ssub.s32 %s15, 2
      %s28 = sadd.s32 1, %s23
      %p29 = scmp.ge.s32.totalorder %s28, 1
      %s30 = scalar_select %p29, 0, %s28
      %s31 = sadd.s32 1, %s22
      %s32 = scalar_select %p29, %s31, %s22
      %p33 = scmp.ge.s32.totalorder %s32, 2
      %s34 = scalar_select %p33, 0, %s32
      %s35 = ssub.s32 %s22, %s34
      %s36 = ssub.s32 %s23, %s30
      %s37 = sor.u32 %s35, %s36
      %p38 = scmp.eq.s32.totalorder %s37, 0
      %s40 = sadd.s32 %s39, 1
      %s41 = scalar_select %p38, %s39, %s40
      %p44 = pneg %p38
      %p45 = scmp.eq.s32.totalorder %s15, 1
      %p46 = por %p44, %p45
      %p47 = scmp.ne.s32.totalorder %s39, %s42
      %p48 = scmp.eq.s32.totalorder %s15, 0
      %p49 = por %p47, %p48
      %p50 = scmp.ne.s32.totalorder %s39, %s42
      %p51 = scmp.eq.s32.totalorder %s20, 1
      %p52 = por %p50, %p51
      %p53 = scmp.ne.s32.totalorder %s42, %s43
      %p54 = scmp.eq.s32.totalorder %s20, 0
      %p55 = por %p53, %p54
      %p56 = scmp.ne.s32.totalorder %s42, %s43
      %p57 = scmp.eq.s32.totalorder %s21, 1
      %p58 = por %p56, %p57
      %p60 = scmp.ne.s32.totalorder %s43, %s59
      %p61 = scmp.eq.s32.totalorder %s21, 0
      %p62 = por %p60, %p61
      %s64 = sadd.s32 %s63, 1
      %p67 = scmp.eq.s32.totalorder %s15, 1
      %p68 = scmp.ne.s32.totalorder %s63, %s65
      %p69 = scmp.eq.s32.totalorder %s15, 0
      %p70 = por %p68, %p69
      %p71 = scmp.ne.s32.totalorder %s63, %s65
      %p72 = scmp.eq.s32.totalorder %s20, 1
      %p73 = por %p71, %p72
      %p74 = scmp.ne.s32.totalorder %s65, %s66
      %p75 = scmp.eq.s32.totalorder %s20, 0
      %p76 = por %p74, %p75
      %p77 = scmp.ne.s32.totalorder %s65, %s66
      %p78 = scmp.eq.s32.totalorder %s21, 1
      %p79 = por %p77, %p78
      %p81 = scmp.ne.s32.totalorder %s66, %s80
      %p82 = scmp.eq.s32.totalorder %s21, 0
      %p83 = por %p81, %p82
      %s85 = sadd.s32 %s84, 1
      %p88 = scmp.eq.s32.totalorder %s15, 1
      %p89 = scmp.ne.s32.totalorder %s84, %s86
      %p90 = scmp.eq.s32.totalorder %s15, 0
      %p91 = por %p89, %p90
      %p92 = scmp.ne.s32.totalorder %s84, %s86
      %p93 = scmp.eq.s32.totalorder %s20, 1
      %p94 = por %p92, %p93
      %p95 = scmp.ne.s32.totalorder %s86, %s87
      %p96 = scmp.eq.s32.totalorder %s20, 0
      %p97 = por %p95, %p96
      %p98 = scmp.ne.s32.totalorder %s86, %s87
      %p99 = scmp.eq.s32.totalorder %s21, 1
      %p100 = por %p98, %p99
      %p102 = scmp.ne.s32.totalorder %s87, %s101
      %p103 = scmp.eq.s32.totalorder %s21, 0
      %p104 = por %p102, %p103
      %s105 = ssub.s32 %s22, %s34
      %s106 = ssub.s32 %s23, %s30
      %s107 = sor.u32 %s105, %s106
      %p108 = scmp.eq.s32.totalorder %s107, 0
      %s110 = sadd.s32 %s109, 1
      %s111 = scalar_select %p108, %s109, %s110
      %p114 = pneg %p108
      %p115 = scmp.eq.s32.totalorder %s15, 1
      %p116 = por %p114, %p115
      %p117 = scmp.ne.s32.totalorder %s109, %s112
      %p118 = scmp.eq.s32.totalorder %s15, 0
      %p119 = por %p117, %p118
      %p120 = scmp.ne.s32.totalorder %s109, %s112
      %p121 = scmp.eq.s32.totalorder %s20, 1
      %p122 = por %p120, %p121
      %p123 = scmp.ne.s32.totalorder %s112, %s113
      %p124 = scmp.eq.s32.totalorder %s20, 0
      %p125 = por %p123, %p124
      %p126 = scmp.ne.s32.totalorder %s112, %s113
      %p127 = scmp.eq.s32.totalorder %s21, 1
      %p128 = por %p126, %p127
      %p130 = scmp.ne.s32.totalorder %s113, %s129
      %p131 = scmp.eq.s32.totalorder %s21, 0
      %p132 = por %p130, %p131
      %p133 = scmp.le.s32.totalorder 1, %s15
      %p134 = scmp.lt.s32.totalorder %s15, 3
      %p135 = pnand %p133, %p134
      %p136 = pneg %p135
      // Predicated region
      $region9: #{tpu_custom_call.1} parent=5 // pred_check
        _
      $region10: #{tpu_custom_call.1} parent=5 // pred_check_branch
        %138 = sbr.rel (%p135) target = $region12
      $region11: #{tpu_custom_call.1} parent=5 // pred_region
        %s139 = ssub.s32 %s15, 1
        // Predicated region
        $region13: #{tpu_custom_call.1} parent=11 // pred_check
          %p140 = pneg %p76
        $region14: #{tpu_custom_call.1} parent=11 // pred_check_branch
          %142 = sbr.rel (%p140) target = $region16
        $region15: #{tpu_custom_call.1} parent=11 // pred_region
          _
        $region16: #{tpu_custom_call.1} parent=11 // pred_fallthru
          _
        // Predicated region
        $region17: #{tpu_custom_call.1} parent=11 // pred_check
          %p143 = pneg %p97
        $region18: #{tpu_custom_call.1} parent=11 // pred_check_branch
          %145 = sbr.rel (%p143) target = $region20
        $region19: #{tpu_custom_call.1} parent=11 // pred_region
          _
        $region20: #{tpu_custom_call.1} parent=11 // pred_fallthru
          _
      $region12: #{tpu_custom_call.1} parent=5 // pred_fallthru
        _
      %p146 = scmp.lt.s32.totalorder %s15, 2
      // Predicated region
      $region21: #{tpu_custom_call.1} parent=5 // pred_check
        %p147 = pneg %p146
      $region22: #{tpu_custom_call.1} parent=5 // pred_check_branch
        %149 = sbr.rel (%p147) target = $region24
      $region23: #{tpu_custom_call.1} parent=5 // pred_region
        // Predicated region
        $region25: #{tpu_custom_call.1} parent=23 // pred_check
          %p150 = pneg %p49
        $region26: #{tpu_custom_call.1} parent=23 // pred_check_branch
          %152 = sbr.rel (%p150) target = $region28
        $region27: #{tpu_custom_call.1} parent=23 // pred_region
          %s153 = sand.u32 %s39, 1
          %s154 = scalar_lea.sflag [#allocation3], %s153
          %s155 = sand.u32 %s39, 1
          %s156 = smul.addr %s155, 64
          %s157 = scalar_lea.vmem [#allocation2], %s156
          %s158 = smul.u32 2, %s23
          %s160 = ssub.s32 1024, 1024
          %161 = vsyncadd %s154, %s160
          %s162 = smul.addr %s22, 8
          %s163 = sadd.s32 %s158, %s162
          %s164 = smul.addr %s163, 128
          %s165 = scalar_lea.hbm %s0, %s164
          %s166 = sshll.u32 %s157, 4
          %s167 = int_to_ptr.vmem [resolvable:$true] %s166
          %172 = dma.hbm_to_vmem [thread:$0]  %s165, 1024, %s167, %s154, 256, 256, 16
        $region28: #{tpu_custom_call.1} parent=23 // pred_fallthru
          _
      $region24: #{tpu_custom_call.1} parent=5 // pred_fallthru
        _
      %p173 = scmp.le.s32.totalorder 1, %s15
      %p174 = scmp.lt.s32.totalorder %s15, 3
      %p175 = pnand %p173, %p174
      %p176 = pneg %p175
      // Predicated region
      $region29: #{tpu_custom_call.1} parent=5 // pred_check
        _
      $region30: #{tpu_custom_call.1} parent=5 // pred_check_branch
        %178 = sbr.rel (%p175) target = $region32
      $region31: #{tpu_custom_call.1} parent=5 // pred_region
        %s179 = ssub.s32 %s15, 1
        %s180 = sand.u32 %s42, 1
        %s181 = scalar_lea.sflag [#allocation3], %s180
        %s182 = sand.u32 %s42, 1
        %s183 = smul.addr %s182, 64
        %s184 = scalar_lea.vmem [#allocation2], %s183
        // Predicated region
        $region33: #{tpu_custom_call.1} parent=31 // pred_check
          %p185 = pneg %p55
        $region34: #{tpu_custom_call.1} parent=31 // pred_check_branch
          %187 = sbr.rel (%p185) target = $region36
        $region35: #{tpu_custom_call.1} parent=31 // pred_region
          %188 = dma.done %s181, 1024
        $region36: #{tpu_custom_call.1} parent=31 // pred_fallthru
          _
        %s189 = sand.u32 %s42, 1
        %s190 = scalar_lea.sflag [#allocation3], %s189
        %s191 = sand.u32 %s42, 1
        %s192 = smul.addr %s191, 64
        %s193 = scalar_lea.vmem [#allocation2], %s192
        %p194 = pneg %p55
        %p195 = pneg %p52
        %p196 = pneg %p76
        %p197 = pneg %p73
        %p198 = pneg %p97
        %p199 = pneg %p94
        %p200 = pneg %p125
        %p201 = pneg %p122
        %s202 = sand.u32 %s112, 1
        %s203 = scalar_lea.sflag [#allocation4], %s202
        %s204 = sand.u32 %s112, 1
        %s205 = smul.addr %s204, 16
        %s206 = scalar_lea.vmem [#allocation5], %s205
        %s207 = smul.u32 2, %s25
        %s208 = smul.u32 2, %s25
        %v210 = vld [vmem:[%s184] sm:$0xff]
        %v211 = vld [vmem:[%s184 + $0x8] sm:$0xff]
        %v212 = vld [vmem:[%s184 + $0x10] sm:$0xff]
        %v213 = vld [vmem:[%s184 + $0x18] sm:$0xff]
        %v214 = vld [vmem:[%s184 + $0x20] sm:$0xff]
        %v215 = vld [vmem:[%s184 + $0x28] sm:$0xff]
        %v216 = vld [vmem:[%s184 + $0x30] sm:$0xff]
        %v217 = vld [vmem:[%s184 + $0x38] sm:$0xff]
        %v218 = vpack.c.bf16 %v212, %v210
        %v219 = vpack.c.bf16 %v213, %v211
        %v220 = vpack.c.bf16 %v216, %v214
        %v221 = vpack.c.bf16 %v217, %v215
        %v222 = vld [vmem:[%s1] sm:$0xf]
        %v223 = vld [vmem:[%s1 + $0x4] sm:$0xf]
        %v224 = vld [vmem:[%s2] sm:$0xff]
        %v225 = vld [vmem:[%s2 + $0x8] sm:$0xff]
        %227 = vset.pattern.permute.xlu0 0
        %228 = vperm.xlu0 %227, %v224
        %v229 = vpop.permute.xlu0 %228
        %232 = vset.pattern.permute.xlu0 0
        %233 = vperm.xlu0 %232, %v225
        %v234 = vpop.permute.xlu0 %233
        %v238 = vunpack.c.l.b16 %v222
        %v239 = vunpack.c.l.b16 %v223
        %v240 = vpack.c.b16 %v239, %v238
        %vm241 = vcmask 261120
        %v243 = vsel %vm241, %v240, 0
        %245 = vmatprep.subr.bf16.mxu0 %v219
        %246 = vmatpush1.bf16.msra.mxu0 %v218
        %247 = vmatprep.subr.bf16.mxu0 %v221
        %248 = vmatpush1.bf16.msra.mxu0 %v220
        %249 = vmatprep.subr.bf16.mxu0 0
        %250 = vmatpush1.bf16.msra.mxu0 0
        %251 = vmatprep.subr.bf16.mxu0 0
        %252 = vmatpush1.bf16.msra.mxu0 0
        %253 = vmatprep.subr.bf16.mxu0 0
        %254 = vmatpush1.bf16.msra.mxu0 0
        %255 = vmatprep.subr.bf16.mxu0 0
        %256 = vmatpush1.bf16.msra.mxu0 0
        %257 = vmatprep.subr.bf16.mxu0 0
        %258 = vmatpush1.bf16.msra.mxu0 0
        %259 = vmatprep.subr.bf16.mxu0 0
        %260 = vmatpush1.bf16.msra.mxu0 0
        %261 = vmatprep.subr.bf16.mxu0 0
        %262 = vmatpush1.bf16.msra.mxu0 0
        %263 = vmatprep.subr.bf16.mxu0 0
        %264 = vmatpush1.bf16.msra.mxu0 0
        %265 = vmatprep.subr.bf16.mxu0 0
        %266 = vmatpush1.bf16.msra.mxu0 0
        %267 = vmatprep.subr.bf16.mxu0 0
        %268 = vmatpush1.bf16.msra.mxu0 0
        %269 = vmatprep.subr.bf16.mxu0 0
        %270 = vmatpush1.bf16.msra.mxu0 0
        %271 = vmatprep.subr.bf16.mxu0 0
        %272 = vmatpush1.bf16.msra.mxu0 0
        %273 = vmatprep.subr.bf16.mxu0 0
        %274 = vmatpush1.bf16.msra.mxu0 0
        %275 = vmatprep.subr.bf16.mxu0 0
        %276 = vmatpush1.bf16.msra.mxu0 0
        %277 = vmatprep.mubr.bf16.mxu0 0
        %278 = vmatmul.mubr.bf16.gmra.mrb[0].mxu0 %v243
        %v279 = vpop.f32.mrb[0].mxu0
        %v280 = vadd.f32 %v229, %v279
        %v281 = vpop.f32.mrb[0].mxu0
        %v282 = vadd.f32 %v229, %v281
        %v283 = vpop.f32.mrb[0].mxu0
        %v284 = vadd.f32 %v234, %v283
        %v285 = vpop.f32.mrb[0].mxu0
        %v286 = vadd.f32 %v234, %v285
        %287 = vdwg.mxu0
        %v288 = vmax.f32 %v280, 0.0
        %v289 = vmax.f32 %v282, 0.0
        %v290 = vmax.f32 %v284, 0.0
        %v291 = vmax.f32 %v286, 0.0
        %v292 = vpack.c.bf16 %v290, %v288
        %v293 = vpack.c.bf16 %v291, %v289
        %v296 = vunpack.c.l.b16 %v292
        %v297 = vunpack.c.l.b16 %v293
        %v298 = vunpack.c.h.b16 %v292
        %v299 = vunpack.c.h.b16 %v293
        %v300 = vpack.c.b16 %v297, %v296
        %v301 = vpack.c.b16 %v299, %v298
        %304 = vst [vmem:[%s206] sm:$0xff] %v300
        %305 = vst [vmem:[%s206 + $0x8] sm:$0xff] %v301
        %s306 = sand.u32 %s112, 1
        %s307 = scalar_lea.sflag [#allocation4], %s306
        %s308 = sand.u32 %s112, 1
        %s309 = smul.addr %s308, 16
        %s310 = scalar_lea.vmem [#allocation5], %s309
        // Predicated region
        $region37: #{tpu_custom_call.1} parent=31 // pred_check
          %p311 = pneg %p122
        $region38: #{tpu_custom_call.1} parent=31 // pred_check_branch
          %313 = sbr.rel (%p311) target = $region40
        $region39: #{tpu_custom_call.1} parent=31 // pred_region
          %s314 = smul.u32 2, %s25
          %s316 = ssub.s32 256, 256
          %317 = vsyncadd %s307, %s316
          %s318 = smul.addr %s24, 4
          %s319 = sadd.s32 %s314, %s318
          %s320 = smul.addr %s319, 64
          %s321 = scalar_lea.hbm %s3, %s320
          %s322 = sshll.u32 %s310, 4
          %s323 = int_to_ptr.vmem [resolvable:$true] %s322
          %328 = dma.vmem_to_hbm [thread:$0]  %s323, 256, %s321, %s307, 128, 128, 8
        $region40: #{tpu_custom_call.1} parent=31 // pred_fallthru
          _
      $region32: #{tpu_custom_call.1} parent=5 // pred_fallthru
        _
      %p329 = scmp.le.s32.totalorder 2, %s15
      // Predicated region
      $region41: #{tpu_custom_call.1} parent=5 // pred_check
        %p330 = pneg %p329
      $region42: #{tpu_custom_call.1} parent=5 // pred_check_branch
        %332 = sbr.rel (%p330) target = $region44
      $region43: #{tpu_custom_call.1} parent=5 // pred_region
        %s333 = ssub.s32 %s15, 2
        // Predicated region
        $region45: #{tpu_custom_call.1} parent=43 // pred_check
          %p334 = pneg %p128
        $region46: #{tpu_custom_call.1} parent=43 // pred_check_branch
          %336 = sbr.rel (%p334) target = $region48
        $region47: #{tpu_custom_call.1} parent=43 // pred_region
          %s337 = sand.u32 %s113, 1
          %s338 = scalar_lea.sflag [#allocation4], %s337
          %s339 = sand.u32 %s113, 1
          %s340 = smul.addr %s339, 16
          %s341 = scalar_lea.vmem [#allocation5], %s340
          %342 = dma.done %s338, 256
        $region48: #{tpu_custom_call.1} parent=43 // pred_fallthru
          _
      $region44: #{tpu_custom_call.1} parent=5 // pred_fallthru
        _
    $region6: #{tpu_custom_call.1} parent=1 // loop_footer
      %s19 = sadd.s32 1, %s15
    $region7: #{tpu_custom_call.1} parent=1 // loop_footer_branch
      %14 = sbr.rel target = $region3
    $region8: #{tpu_custom_call.1} parent=1 // loop_exit
      _
    %343 = vsyncpa [#allocation3], 1
    %s344 = scalar_lea.sflag [#allocation3], 1
    %345 = vsyncpa %s344, 1
    %346 = vsyncpa [#allocation4], 1
    %s347 = scalar_lea.sflag [#allocation4], 1
    %348 = vsyncpa %s347, 1

</llo_original>
